<compile_context>
chip_gen: v5e
topology: v5e:2x2
jax: 0.10.0
libtpu: 0.0.40
codegen_flags: <defaults>
</compile_context>

<pallas_src>
import jax
import jax.numpy as jnp
from jax.experimental import pallas as pl
from jax.experimental.pallas import tpu as pltpu


def _round_up(n, m):
    return ((n + m - 1) // m) * m


def _tpu_kind():
    try:
        return jax.devices()[0].device_kind.lower()
    except Exception:
        return ""


def _mylinear3_kernel(x_ref, w1_ref, w2_ref, b2_ref, o_ref):
    # x_ref: (TB, 9) f32, batch on sublanes (contiguous HBM rows).
    x = x_ref[...]
    l_out = x[:, 6:9]

    # Gated inputs for both branches + a ones column that carries the fused
    # layer-1 bias (w1 row 6 = [b11;b21], row 7 = 0 so K is a clean 8).
    ones2 = jnp.ones((x.shape[0], 2), x.dtype)
    gated = jnp.concatenate([x[:, 0:3] * l_out, x[:, 3:6] * l_out, ones2],
                            axis=1)                          # (TB, 8) f32
    gated = gated.astype(jnp.bfloat16)

    # Fused layer 1: (TB, 8) @ (8, 200) -> (TB, 200), f32 accumulation.
    h = jnp.dot(gated, w1_ref[...], preferred_element_type=jnp.float32)
    h = jnp.clip(h, 0.0, 6.0).astype(jnp.bfloat16)           # relu6, bf16 for MXU

    # Fused layer 2: (TB, 200) @ (200, 2) -> (TB, 2), plus packed bias.
    o = jnp.dot(h, w2_ref[...], preferred_element_type=jnp.float32)
    o_ref[...] = (o + b2_ref[...]).astype(o_ref.dtype)


def mylinear3_forward(x, packed, *, block_b=None):
    """x: (B, 9) float32.  packed: dict from pack_params().  Returns (B, 2)."""
    B = x.shape[0]

    kind = _tpu_kind()
    if ("v4" in kind) or ("v5" in kind) or ("v6" in kind):
        default_block, vmem_limit, is_v7 = 8192, 100 << 20, False
    elif "7" in kind:                       # v7x: 64 MiB physical VMEM, 2 TCs
        default_block, vmem_limit, is_v7 = 2048, 48 << 20, True
    else:                                   # unknown: settings safe everywhere
        default_block, vmem_limit, is_v7 = 2048, 48 << 20, False

    if block_b is None:
        block_b = default_block
    block_b = max(128, _round_up(block_b, 128))   # keep lane/sublane rules safe

    # Adaptive tile: bound padding waste to <128 rows per tile.
    num_tiles = pl.cdiv(max(B, 1), block_b)
    TB = min(block_b, _round_up(pl.cdiv(max(B, 1), num_tiles), 128))
    B_pad = TB * num_tiles
    if B_pad != B:
        x = jnp.pad(x, ((0, B_pad - B), (0, 0)))  # padded rows sliced off below

    if is_v7 and num_tiles >= 2:
        dims = (pltpu.CORE_PARALLEL,)             # actually split across 2 TCs
    else:
        dims = ("parallel",)

    out = pl.pallas_call(
        _mylinear3_kernel,
        out_shape=jax.ShapeDtypeStruct((B_pad, 2), jnp.float32),
        grid=(num_tiles,),
        in_specs=[
            pl.BlockSpec((TB, 9), lambda i: (i, 0)),     # x rows (contiguous)
            pl.BlockSpec((7 + 1, 200), lambda i: (0, 0)),  # fused W1 (+bias row)
            pl.BlockSpec((200, 2), lambda i: (0, 0)),    # fused W2
            pl.BlockSpec((1, 2), lambda i: (0, 0)),      # fused b2
        ],
        out_specs=pl.BlockSpec((TB, 2), lambda i: (i, 0)),
        compiler_params=pltpu.CompilerParams(
            dimension_semantics=dims,
            vmem_limit_bytes=vmem_limit,
        ),
    )(x, packed["w1"], packed["w2"], packed["b2"])

    return out[:B] if B_pad != B else out


def init_params(key):
    """PyTorch-layout params: weight (out_features, in_features), bias (out,)."""
    def linear(k, fan_in, fan_out):
        kw, kb = jax.random.split(k)
        bound = 1.0 / jnp.sqrt(float(fan_in))
        w = jax.random.uniform(kw, (fan_out, fan_in), jnp.float32, -bound, bound)
        b = jax.random.uniform(kb, (fan_out,), jnp.float32, -bound, bound)
        return w, b

    k1, k2, k3, k4 = jax.random.split(key, 4)
    w11, b11 = linear(k1, 3, 100)     # hidden1_1
    w21, b21 = linear(k2, 3, 100)     # hidden2_1
    w12, b12 = linear(k3, 100, 1)     # hidden1_2
    w22, b22 = linear(k4, 100, 1)     # hidden2_2
    return dict(w11=w11, b11=b11, w21=w21, b21=b21,
                w12=w12, b12=b12, w22=w22, b22=b22)


def pack_params(p):
    """Fused block-diagonal weights (math orientation, bf16) for the kernel.

    w1: (8, 200)  rows 0:3 = w11^T -> cols 0:100, rows 3:6 = w21^T -> cols 100:200,
                  row 6 = [b11; b21] (picked up by the in-kernel ones column),
                  row 7 = 0 (K padding).
    w2: (200, 2)  col 0 rows 0:100 = w12, col 1 rows 100:200 = w22.
    b2: (1, 2)    [b12, b22] (kept f32).
    """
    w1 = jnp.zeros((8, 200), jnp.float32)
    w1 = w1.at[0:3, 0:100].set(p["w11"].T)
    w1 = w1.at[3:6, 100:200].set(p["w21"].T)
    w1 = w1.at[6, 0:100].set(p["b11"])
    w1 = w1.at[6, 100:200].set(p["b21"])

    w2 = jnp.zeros((200, 2), jnp.float32)
    w2 = w2.at[0:100, 0].set(p["w12"][0])
    w2 = w2.at[100:200, 1].set(p["w22"][0])

    b2 = jnp.concatenate([p["b12"], p["b22"]]).reshape(1, 2)
    return dict(w1=w1.astype(jnp.bfloat16),
                w2=w2.astype(jnp.bfloat16),
                b2=b2)


def mylinear3_reference(x, p):
    """Pure-JAX f32 reference matching the PyTorch forward."""
    x1, x2, l_out = x[:, 0:3], x[:, 3:6], x[:, 6:9]
    h1 = jnp.clip((x1 * l_out) @ p["w11"].T + p["b11"], 0.0, 6.0)
    h2 = jnp.clip((x2 * l_out) @ p["w21"].T + p["b21"], 0.0, 6.0)
    o1 = h1 @ p["w12"].T + p["b12"]
    o2 = h2 @ p["w22"].T + p["b22"]
    return jnp.concatenate([o1, o2], axis=1)


if __name__ == "__main__":
    key = jax.random.PRNGKey(0)
    k_x, k_p = jax.random.split(key)

    B = 8
    x = jax.random.normal(k_x, (B, 9), dtype=jnp.float32)
    params = init_params(k_p)
    packed = pack_params(params)

    out = mylinear3_forward(x, packed)
    out = jax.block_until_ready(out)

    ref = mylinear3_reference(x, params)
    assert out.shape == (B, 2)
    # Tolerance loosened for bf16 MXU operands (f32 accumulation retained).
    assert jnp.allclose(out, ref, atol=5e-2, rtol=5e-2), "mismatch vs reference"

    print("KERNEL_OK")
</pallas_src>

<mosaic_0001>
module attributes {stable_mosaic.version = 11 : i64} {
  func.func @_mylinear3_kernel(%arg0: i32, %arg1: memref<128x9xf32, #tpu.memory_space<vmem>>, %arg2: memref<8x200xbf16, #tpu.memory_space<vmem>>, %arg3: memref<200x2xbf16, #tpu.memory_space<vmem>>, %arg4: memref<1x2xf32, #tpu.memory_space<vmem>>, %arg5: memref<128x2xf32, #tpu.memory_space<vmem>>) attributes {dimension_semantics = [#tpu.dimension_semantics<parallel>], iteration_bounds = array<i64: 1>, scalar_prefetch = 0 : i64, scratch_operands = 0 : i64, tpu.core_type = #tpu.core_type<tc>, window_params = [{transform_indices = @transform_0, window_bounds = array<i64: 128, 9>}, {pipeline_mode = #tpu.pipeline_mode<synchronous>, transform_indices = @transform_1, window_bounds = array<i64: 8, 200>}, {pipeline_mode = #tpu.pipeline_mode<synchronous>, transform_indices = @transform_2, window_bounds = array<i64: 200, 2>}, {pipeline_mode = #tpu.pipeline_mode<synchronous>, transform_indices = @transform_3, window_bounds = array<i64: 1, 2>}, {transform_indices = @transform_4, window_bounds = array<i64: 128, 2>}]} {
    %c0 = arith.constant 0 : index
    %c0_0 = arith.constant 0 : index
    %0 = vector.load %arg1[%c0, %c0_0] : memref<128x9xf32, #tpu.memory_space<vmem>>, vector<128x9xf32>
    %1 = vector.extract_strided_slice %0 {offsets = [0, 6], sizes = [128, 3], strides = [1, 1]} : vector<128x9xf32> to vector<128x3xf32>
    %cst = arith.constant 1.000000e+00 : f32
    %2 = vector.broadcast %cst : f32 to vector<128x2xf32>
    %3 = vector.extract_strided_slice %0 {offsets = [0, 0], sizes = [128, 3], strides = [1, 1]} : vector<128x9xf32> to vector<128x3xf32>
    %4 = arith.mulf %3, %1 : vector<128x3xf32>
    %5 = vector.extract_strided_slice %0 {offsets = [0, 3], sizes = [128, 3], strides = [1, 1]} : vector<128x9xf32> to vector<128x3xf32>
    %6 = arith.mulf %5, %1 : vector<128x3xf32>
    %7 = tpu.concatenate %4, %6, %2 in 1 : vector<128x3xf32>, vector<128x3xf32>, vector<128x2xf32> -> vector<128x8xf32>
    %8 = arith.truncf %7 : vector<128x8xf32> to vector<128x8xbf16>
    %c0_1 = arith.constant 0 : index
    %c0_2 = arith.constant 0 : index
    %9 = vector.load %arg2[%c0_1, %c0_2] : memref<8x200xbf16, #tpu.memory_space<vmem>>, vector<8x200xbf16>
    %cst_3 = arith.constant dense<0.000000e+00> : vector<128x200xf32>
    %10 = tpu.matmul %8, %9, %cst_3 {dimension_numbers = #tpu.dot_dimension_numbers<[1], [0], [0], [1], [0, 0, 1, 1], [], []>} : vector<128x8xbf16>, vector<8x200xbf16>, vector<128x200xf32> -> vector<128x200xf32>
    %cst_4 = arith.constant 0.000000e+00 : f32
    %cst_5 = arith.constant 6.000000e+00 : f32
    %11 = vector.broadcast %cst_4 : f32 to vector<128x200xf32>
    %12 = arith.maximumf %11, %10 : vector<128x200xf32>
    %13 = vector.broadcast %cst_5 : f32 to vector<128x200xf32>
    %14 = arith.minimumf %13, %12 : vector<128x200xf32>
    %15 = arith.truncf %14 : vector<128x200xf32> to vector<128x200xbf16>
    %c0_6 = arith.constant 0 : index
    %c0_7 = arith.constant 0 : index
    %16 = vector.load %arg3[%c0_6, %c0_7] : memref<200x2xbf16, #tpu.memory_space<vmem>>, vector<200x2xbf16>
    %cst_8 = arith.constant dense<0.000000e+00> : vector<128x2xf32>
    %17 = tpu.matmul %15, %16, %cst_8 {dimension_numbers = #tpu.dot_dimension_numbers<[1], [0], [0], [1], [0, 0, 1, 1], [], []>} : vector<128x200xbf16>, vector<200x2xbf16>, vector<128x2xf32> -> vector<128x2xf32>
    %c0_9 = arith.constant 0 : index
    %c0_10 = arith.constant 0 : index
    %18 = vector.load %arg4[%c0_9, %c0_10] : memref<1x2xf32, #tpu.memory_space<vmem>>, vector<1x2xf32>
    %19 = vector.broadcast %18 : vector<1x2xf32> to vector<128x2xf32>
    %20 = arith.addf %17, %19 : vector<128x2xf32>
    %c0_11 = arith.constant 0 : index
    %c0_12 = arith.constant 0 : index
    %21 = vector.load %arg5[%c0_11, %c0_12] : memref<128x2xf32, #tpu.memory_space<vmem>>, vector<128x2xf32>
    tpu.vector_store %arg5[%c0_11, %c0_12], %20 {strides = array<i32>} : memref<128x2xf32, #tpu.memory_space<vmem>>, vector<128x2xf32>,
    return
  }
  func.func @transform_0(%arg0: i32) -> (i32, i32) {
    %c0_i32 = arith.constant 0 : i32
    %c0_i32_0 = arith.constant 0 : i32
    return %arg0, %c0_i32 : i32, i32
  }
  func.func @transform_1(%arg0: i32) -> (i32, i32) {
    %c0_i32 = arith.constant 0 : i32
    %c0_i32_0 = arith.constant 0 : i32
    %c0_i32_1 = arith.constant 0 : i32
    return %c0_i32, %c0_i32_0 : i32, i32
  }
  func.func @transform_2(%arg0: i32) -> (i32, i32) {
    %c0_i32 = arith.constant 0 : i32
    %c0_i32_0 = arith.constant 0 : i32
    %c0_i32_1 = arith.constant 0 : i32
    return %c0_i32, %c0_i32_0 : i32, i32
  }
  func.func @transform_3(%arg0: i32) -> (i32, i32) {
    %c0_i32 = arith.constant 0 : i32
    %c0_i32_0 = arith.constant 0 : i32
    %c0_i32_1 = arith.constant 0 : i32
    return %c0_i32, %c0_i32_0 : i32, i32
  }
  func.func @transform_4(%arg0: i32) -> (i32, i32) {
    %c0_i32 = arith.constant 0 : i32
    %c0_i32_0 = arith.constant 0 : i32
    return %arg0, %c0_i32 : i32, i32
  }
}

</mosaic_0001>

<llo_original>
// kernel: tpu_custom_call.1
$region0: #{tpu_custom_call.1}
  #allocation0 [shape = 'u32[]', space=smem, size = 0x4, offset = 0x4, fixed_abs, tag = 'smem constant byte address 0x4 - core index']
  #allocation1 [shape = 'u32[72,128]{1,0:T(1,128)}', space=vmem, size = 0x9000, scoped, tag = 'internal scratch']
  %s0 = inlined_call_operand.vmem [shape: f32[128,9], index: 0, kind: input, shape index: {}]
  %s1 = inlined_call_operand.vmem [shape: bf16[8,200], index: 1, kind: input, shape index: {}]
  %s2 = inlined_call_operand.vmem [shape: bf16[200,2], index: 2, kind: input, shape index: {}]
  %s3 = inlined_call_operand.vmem [shape: f32[1,2], index: 3, kind: input, shape index: {}]
  %s4 = inlined_call_operand.vmem [shape: f32[128,2], index: 4, kind: output, shape index: {}]
  %s5 = sld [smem:[#allocation0]]
  $region26: #{tpu_custom_call.1} parent=0
    _
  %s7 = ssub.s32 1, %s5
  %s8 = scalar_select 0, %s7, %s5
  // Predicated region
  $region2: #{tpu_custom_call.1} parent=0 // pred_check
    _
  $region3: #{tpu_custom_call.1} parent=0 // pred_check_branch
    %10 = sbr.rel (0) target = $region5
  $region4: #{tpu_custom_call.1} parent=0 // pred_region
    _
  $region5: #{tpu_custom_call.1} parent=0 // pred_fallthru
    _
  // Predicated region
  $region6: #{tpu_custom_call.1} parent=0 // pred_check
    _
  $region7: #{tpu_custom_call.1} parent=0 // pred_check_branch
    %12 = sbr.rel (0) target = $region9
  $region8: #{tpu_custom_call.1} parent=0 // pred_region
    _
  $region9: #{tpu_custom_call.1} parent=0 // pred_fallthru
    _
  // Predicated region
  $region10: #{tpu_custom_call.1} parent=0 // pred_check
    _
  $region11: #{tpu_custom_call.1} parent=0 // pred_check_branch
    %14 = sbr.rel (0) target = $region13
  $region12: #{tpu_custom_call.1} parent=0 // pred_region
    _
  $region13: #{tpu_custom_call.1} parent=0 // pred_fallthru
    _
  // Predicated region
  $region14: #{tpu_custom_call.1} parent=0 // pred_check
    _
  $region15: #{tpu_custom_call.1} parent=0 // pred_check_branch
    %16 = sbr.rel (0) target = $region17
  $region16: #{tpu_custom_call.1} parent=0 // pred_region
    _
  $region17: #{tpu_custom_call.1} parent=0 // pred_fallthru
    _
  %v18 = vld [vmem:[%s0] sm:$0xff]
  %v19 = vld [vmem:[%s0 + $0x8] sm:$0xff]
  %v20 = vld [vmem:[%s0 + $0x10] sm:$0xff]
  %v21 = vld [vmem:[%s0 + $0x18] sm:$0xff]
  %v22 = vld [vmem:[%s0 + $0x20] sm:$0xff]
  %v23 = vld [vmem:[%s0 + $0x28] sm:$0xff]
  %v24 = vld [vmem:[%s0 + $0x30] sm:$0xff]
  %v25 = vld [vmem:[%s0 + $0x38] sm:$0xff]
  %v26 = vld [vmem:[%s0 + $0x40] sm:$0xff]
  %v27 = vld [vmem:[%s0 + $0x48] sm:$0xff]
  %v28 = vld [vmem:[%s0 + $0x50] sm:$0xff]
  %v29 = vld [vmem:[%s0 + $0x58] sm:$0xff]
  %v30 = vld [vmem:[%s0 + $0x60] sm:$0xff]
  %v31 = vld [vmem:[%s0 + $0x68] sm:$0xff]
  %v32 = vld [vmem:[%s0 + $0x70] sm:$0xff]
  %v33 = vld [vmem:[%s0 + $0x78] sm:$0xff]
  %50 = vrot.lane.b32.xlu0 %v18, 122
  %v51 = vpop.permute.xlu0 %50
  %52 = vrot.lane.b32.xlu0 %v19, 122
  %v53 = vpop.permute.xlu0 %52
  %54 = vrot.lane.b32.xlu0 %v20, 122
  %v55 = vpop.permute.xlu0 %54
  %56 = vrot.lane.b32.xlu0 %v21, 122
  %v57 = vpop.permute.xlu0 %56
  %58 = vrot.lane.b32.xlu0 %v22, 122
  %v59 = vpop.permute.xlu0 %58
  %60 = vrot.lane.b32.xlu0 %v23, 122
  %v61 = vpop.permute.xlu0 %60
  %62 = vrot.lane.b32.xlu0 %v24, 122
  %v63 = vpop.permute.xlu0 %62
  %64 = vrot.lane.b32.xlu0 %v25, 122
  %v65 = vpop.permute.xlu0 %64
  %66 = vrot.lane.b32.xlu0 %v26, 122
  %v67 = vpop.permute.xlu0 %66
  %68 = vrot.lane.b32.xlu0 %v27, 122
  %v69 = vpop.permute.xlu0 %68
  %70 = vrot.lane.b32.xlu0 %v28, 122
  %v71 = vpop.permute.xlu0 %70
  %72 = vrot.lane.b32.xlu0 %v29, 122
  %v73 = vpop.permute.xlu0 %72
  %74 = vrot.lane.b32.xlu0 %v30, 122
  %v75 = vpop.permute.xlu0 %74
  %76 = vrot.lane.b32.xlu0 %v31, 122
  %v77 = vpop.permute.xlu0 %76
  %78 = vrot.lane.b32.xlu0 %v32, 122
  %v79 = vpop.permute.xlu0 %78
  %80 = vrot.lane.b32.xlu0 %v33, 122
  %v81 = vpop.permute.xlu0 %80
  %v98 = vmul.f32 %v18, %v51
  %v99 = vmul.f32 %v19, %v53
  %v100 = vmul.f32 %v20, %v55
  %v101 = vmul.f32 %v21, %v57
  %v102 = vmul.f32 %v22, %v59
  %v103 = vmul.f32 %v23, %v61
  %v104 = vmul.f32 %v24, %v63
  %v105 = vmul.f32 %v25, %v65
  %v106 = vmul.f32 %v26, %v67
  %v107 = vmul.f32 %v27, %v69
  %v108 = vmul.f32 %v28, %v71
  %v109 = vmul.f32 %v29, %v73
  %v110 = vmul.f32 %v30, %v75
  %v111 = vmul.f32 %v31, %v77
  %v112 = vmul.f32 %v32, %v79
  %v113 = vmul.f32 %v33, %v81
  %114 = vrot.lane.b32.xlu0 %v18, 125
  %v115 = vpop.permute.xlu0 %114
  %116 = vrot.lane.b32.xlu0 %v19, 125
  %v117 = vpop.permute.xlu0 %116
  %118 = vrot.lane.b32.xlu0 %v20, 125
  %v119 = vpop.permute.xlu0 %118
  %120 = vrot.lane.b32.xlu0 %v21, 125
  %v121 = vpop.permute.xlu0 %120
  %122 = vrot.lane.b32.xlu0 %v22, 125
  %v123 = vpop.permute.xlu0 %122
  %124 = vrot.lane.b32.xlu0 %v23, 125
  %v125 = vpop.permute.xlu0 %124
  %126 = vrot.lane.b32.xlu0 %v24, 125
  %v127 = vpop.permute.xlu0 %126
  %128 = vrot.lane.b32.xlu0 %v25, 125
  %v129 = vpop.permute.xlu0 %128
  %130 = vrot.lane.b32.xlu0 %v26, 125
  %v131 = vpop.permute.xlu0 %130
  %132 = vrot.lane.b32.xlu0 %v27, 125
  %v133 = vpop.permute.xlu0 %132
  %134 = vrot.lane.b32.xlu0 %v28, 125
  %v135 = vpop.permute.xlu0 %134
  %136 = vrot.lane.b32.xlu0 %v29, 125
  %v137 = vpop.permute.xlu0 %136
  %138 = vrot.lane.b32.xlu0 %v30, 125
  %v139 = vpop.permute.xlu0 %138
  %140 = vrot.lane.b32.xlu0 %v31, 125
  %v141 = vpop.permute.xlu0 %140
  %142 = vrot.lane.b32.xlu0 %v32, 125
  %v143 = vpop.permute.xlu0 %142
  %144 = vrot.lane.b32.xlu0 %v33, 125
  %v145 = vpop.permute.xlu0 %144
  %v162 = vmul.f32 %v18, %v115
  %v163 = vmul.f32 %v19, %v117
  %v164 = vmul.f32 %v20, %v119
  %v165 = vmul.f32 %v21, %v121
  %v166 = vmul.f32 %v22, %v123
  %v167 = vmul.f32 %v23, %v125
  %v168 = vmul.f32 %v24, %v127
  %v169 = vmul.f32 %v25, %v129
  %v170 = vmul.f32 %v26, %v131
  %v171 = vmul.f32 %v27, %v133
  %v172 = vmul.f32 %v28, %v135
  %v173 = vmul.f32 %v29, %v137
  %v174 = vmul.f32 %v30, %v139
  %v175 = vmul.f32 %v31, %v141
  %v176 = vmul.f32 %v32, %v143
  %v177 = vmul.f32 %v33, %v145
  %vm178 = vcmask 23552
  %v179 = vsel %vm178, %v98, %v162
  %v180 = vsel %vm178, %v99, %v163
  %v181 = vsel %vm178, %v100, %v164
  %v182 = vsel %vm178, %v101, %v165
  %v183 = vsel %vm178, %v102, %v166
  %v184 = vsel %vm178, %v103, %v167
  %v185 = vsel %vm178, %v104, %v168
  %v186 = vsel %vm178, %v105, %v169
  %v187 = vsel %vm178, %v106, %v170
  %v188 = vsel %vm178, %v107, %v171
  %v189 = vsel %vm178, %v108, %v172
  %v190 = vsel %vm178, %v109, %v173
  %v191 = vsel %vm178, %v110, %v174
  %v192 = vsel %vm178, %v111, %v175
  %v193 = vsel %vm178, %v112, %v176
  %v194 = vsel %vm178, %v113, %v177
  %vm195 = vcmask 48128
  %v196 = vsel %vm195, %v179, 1.0
  %v197 = vsel %vm195, %v180, 1.0
  %v198 = vsel %vm195, %v181, 1.0
  %v199 = vsel %vm195, %v182, 1.0
  %v200 = vsel %vm195, %v183, 1.0
  %v201 = vsel %vm195, %v184, 1.0
  %v202 = vsel %vm195, %v185, 1.0
  %v203 = vsel %vm195, %v186, 1.0
  %v204 = vsel %vm195, %v187, 1.0
  %v205 = vsel %vm195, %v188, 1.0
  %v206 = vsel %vm195, %v189, 1.0
  %v207 = vsel %vm195, %v190, 1.0
  %v208 = vsel %vm195, %v191, 1.0
  %v209 = vsel %vm195, %v192, 1.0
  %v210 = vsel %vm195, %v193, 1.0
  %v211 = vsel %vm195, %v194, 1.0
  %v212 = vpack.c.bf16 %v197, %v196
  %v213 = vpack.c.bf16 %v199, %v198
  %v214 = vpack.c.bf16 %v201, %v200
  %v215 = vpack.c.bf16 %v203, %v202
  %v216 = vpack.c.bf16 %v205, %v204
  %v217 = vpack.c.bf16 %v207, %v206
  %v218 = vpack.c.bf16 %v209, %v208
  %v219 = vpack.c.bf16 %v211, %v210
  %v220 = vld [vmem:[%s1] sm:$0xff]
  %v222 = vunpack.c.l.b16 %v220
  %v223 = vunpack.c.h.b16 %v220
  %v224 = vpack.c.b16 %v222, %v222
  %v225 = vpack.c.b16 %v223, %v223
  %vm226 = vcmask 64512
  %v228 = vsel %vm226, %v212, 0
  %v231 = vsel %vm226, %v213, 0
  %v234 = vsel %vm226, %v214, 0
  %v237 = vsel %vm226, %v215, 0
  %v240 = vsel %vm226, %v216, 0
  %v243 = vsel %vm226, %v217, 0
  %v246 = vsel %vm226, %v218, 0
  %v249 = vsel %vm226, %v219, 0
  %vm251 = vcmask 1043456
  %v253 = vsel %vm251, %v224, 0
  %v256 = vsel %vm251, %v225, 0
  %258 = vmatpush.bf16.msra.mxu0 0
  %259 = vmatpush.bf16.msra.mxu0 0
  %260 = vmatpush.bf16.msra.mxu0 0
  %261 = vmatpush.bf16.msra.mxu0 0
  %262 = vmatpush.bf16.msra.mxu0 0
  %263 = vmatpush.bf16.msra.mxu0 0
  %264 = vmatpush.bf16.msra.mxu0 0
  %265 = vmatpush.bf16.msra.mxu0 %v253
  %266 = vmatmul.bf16.gmra.mxu0 %v228
  %v267 = vpop.f32.mrf.mxu0
  %v268 = vadd.f32 0.0, %v267
  %v269 = vpop.f32.mrf.mxu0
  %v270 = vadd.f32 0.0, %v269
  %271 = vmatmul.bf16.gmra.mxu0 %v231
  %v272 = vpop.f32.mrf.mxu0
  %v273 = vadd.f32 0.0, %v272
  %v274 = vpop.f32.mrf.mxu0
  %v275 = vadd.f32 0.0, %v274
  %276 = vmatmul.bf16.gmra.mxu0 %v234
  %v277 = vpop.f32.mrf.mxu0
  %v278 = vadd.f32 0.0, %v277
  %v279 = vpop.f32.mrf.mxu0
  %v280 = vadd.f32 0.0, %v279
  %281 = vmatmul.bf16.gmra.mxu0 %v237
  %v282 = vpop.f32.mrf.mxu0
  %v283 = vadd.f32 0.0, %v282
  %v284 = vpop.f32.mrf.mxu0
  %v285 = vadd.f32 0.0, %v284
  %286 = vmatmul.bf16.gmra.mxu0 %v240
  %v287 = vpop.f32.mrf.mxu0
  %v288 = vadd.f32 0.0, %v287
  %v289 = vpop.f32.mrf.mxu0
  %v290 = vadd.f32 0.0, %v289
  %291 = vmatmul.bf16.gmra.mxu0 %v243
  %v292 = vpop.f32.mrf.mxu0
  %v293 = vadd.f32 0.0, %v292
  %v294 = vpop.f32.mrf.mxu0
  %v295 = vadd.f32 0.0, %v294
  %296 = vmatmul.bf16.gmra.mxu0 %v246
  %v297 = vpop.f32.mrf.mxu0
  %v298 = vadd.f32 0.0, %v297
  %v299 = vpop.f32.mrf.mxu0
  %v300 = vadd.f32 0.0, %v299
  %301 = vmatmul.bf16.gmra.mxu0 %v249
  %v302 = vpop.f32.mrf.mxu0
  %v303 = vadd.f32 0.0, %v302
  %v304 = vpop.f32.mrf.mxu0
  %v305 = vadd.f32 0.0, %v304
  %306 = vdwg.mxu0
  %307 = vmatpush.bf16.msra.mxu0 0
  %308 = vmatpush.bf16.msra.mxu0 0
  %309 = vmatpush.bf16.msra.mxu0 0
  %310 = vmatpush.bf16.msra.mxu0 0
  %311 = vmatpush.bf16.msra.mxu0 0
  %312 = vmatpush.bf16.msra.mxu0 0
  %313 = vmatpush.bf16.msra.mxu0 0
  %314 = vmatpush.bf16.msra.mxu0 %v256
  %315 = vmatmul.bf16.gmra.mxu0 %v228
  %v316 = vpop.f32.mrf.mxu0
  %v317 = vadd.f32 0.0, %v316
  %v318 = vpop.f32.mrf.mxu0
  %v319 = vadd.f32 0.0, %v318
  %320 = vmatmul.bf16.gmra.mxu0 %v231
  %v321 = vpop.f32.mrf.mxu0
  %v322 = vadd.f32 0.0, %v321
  %v323 = vpop.f32.mrf.mxu0
  %v324 = vadd.f32 0.0, %v323
  %325 = vmatmul.bf16.gmra.mxu0 %v234
  %v326 = vpop.f32.mrf.mxu0
  %v327 = vadd.f32 0.0, %v326
  %v328 = vpop.f32.mrf.mxu0
  %v329 = vadd.f32 0.0, %v328
  %330 = vmatmul.bf16.gmra.mxu0 %v237
  %v331 = vpop.f32.mrf.mxu0
  %v332 = vadd.f32 0.0, %v331
  %v333 = vpop.f32.mrf.mxu0
  %v334 = vadd.f32 0.0, %v333
  %335 = vmatmul.bf16.gmra.mxu0 %v240
  %v336 = vpop.f32.mrf.mxu0
  %v337 = vadd.f32 0.0, %v336
  %v338 = vpop.f32.mrf.mxu0
  %v339 = vadd.f32 0.0, %v338
  %340 = vmatmul.bf16.gmra.mxu0 %v243
  %v341 = vpop.f32.mrf.mxu0
  %v342 = vadd.f32 0.0, %v341
  %v343 = vpop.f32.mrf.mxu0
  %v344 = vadd.f32 0.0, %v343
  %345 = vmatmul.bf16.gmra.mxu0 %v246
  %v346 = vpop.f32.mrf.mxu0
  %v347 = vadd.f32 0.0, %v346
  %v348 = vpop.f32.mrf.mxu0
  %v349 = vadd.f32 0.0, %v348
  %350 = vmatmul.bf16.gmra.mxu0 %v249
  %v351 = vpop.f32.mrf.mxu0
  %v352 = vadd.f32 0.0, %v351
  %v353 = vpop.f32.mrf.mxu0
  %v354 = vadd.f32 0.0, %v353
  %355 = vdwg.mxu0
  %v356 = vmax.f32 %v268, 0.0
  %v357 = vmax.f32 %v317, 0.0
  %v358 = vmax.f32 %v270, 0.0
  %v359 = vmax.f32 %v319, 0.0
  %v360 = vmax.f32 %v273, 0.0
  %v361 = vmax.f32 %v322, 0.0
  %v362 = vmax.f32 %v275, 0.0
  %v363 = vmax.f32 %v324, 0.0
  %v364 = vmax.f32 %v278, 0.0
  %v365 = vmax.f32 %v327, 0.0
  %v366 = vmax.f32 %v280, 0.0
  %v367 = vmax.f32 %v329, 0.0
  %v368 = vmax.f32 %v283, 0.0
  %v369 = vmax.f32 %v332, 0.0
  %v370 = vmax.f32 %v285, 0.0
  %v371 = vmax.f32 %v334, 0.0
  %v372 = vmax.f32 %v288, 0.0
  %v373 = vmax.f32 %v337, 0.0
  %v374 = vmax.f32 %v290, 0.0
  %v375 = vmax.f32 %v339, 0.0
  %v376 = vmax.f32 %v293, 0.0
  %v377 = vmax.f32 %v342, 0.0
  %v378 = vmax.f32 %v295, 0.0
  %v379 = vmax.f32 %v344, 0.0
  %v380 = vmax.f32 %v298, 0.0
  %v381 = vmax.f32 %v347, 0.0
  %v382 = vmax.f32 %v300, 0.0
  %v383 = vmax.f32 %v349, 0.0
  %v384 = vmax.f32 %v303, 0.0
  %v385 = vmax.f32 %v352, 0.0
  %v386 = vmax.f32 %v305, 0.0
  %v387 = vmax.f32 %v354, 0.0
  %v388 = vmin.f32 %v356, 6.0
  %v389 = vmin.f32 %v357, 6.0
  %v390 = vmin.f32 %v358, 6.0
  %v391 = vmin.f32 %v359, 6.0
  %v392 = vmin.f32 %v360, 6.0
  %v393 = vmin.f32 %v361, 6.0
  %v394 = vmin.f32 %v362, 6.0
  %v395 = vmin.f32 %v363, 6.0
  %v396 = vmin.f32 %v364, 6.0
  %v397 = vmin.f32 %v365, 6.0
  %v398 = vmin.f32 %v366, 6.0
  %v399 = vmin.f32 %v367, 6.0
  %v400 = vmin.f32 %v368, 6.0
  %v401 = vmin.f32 %v369, 6.0
  %v402 = vmin.f32 %v370, 6.0
  %v403 = vmin.f32 %v371, 6.0
  %v404 = vmin.f32 %v372, 6.0
  %v405 = vmin.f32 %v373, 6.0
  %v406 = vmin.f32 %v374, 6.0
  %v407 = vmin.f32 %v375, 6.0
  %v408 = vmin.f32 %v376, 6.0
  %v409 = vmin.f32 %v377, 6.0
  %v410 = vmin.f32 %v378, 6.0
  %v411 = vmin.f32 %v379, 6.0
  %v412 = vmin.f32 %v380, 6.0
  %v413 = vmin.f32 %v381, 6.0
  %v414 = vmin.f32 %v382, 6.0
  %v415 = vmin.f32 %v383, 6.0
  %v416 = vmin.f32 %v384, 6.0
  %v417 = vmin.f32 %v385, 6.0
  %v418 = vmin.f32 %v386, 6.0
  %v419 = vmin.f32 %v387, 6.0
  %v420 = vpack.c.bf16 %v390, %v388
  %v421 = vpack.c.bf16 %v391, %v389
  %v422 = vpack.c.bf16 %v394, %v392
  %v423 = vpack.c.bf16 %v395, %v393
  %v424 = vpack.c.bf16 %v398, %v396
  %v425 = vpack.c.bf16 %v399, %v397
  %v426 = vpack.c.bf16 %v402, %v400
  %v427 = vpack.c.bf16 %v403, %v401
  %v428 = vpack.c.bf16 %v406, %v404
  %v429 = vpack.c.bf16 %v407, %v405
  %v430 = vpack.c.bf16 %v410, %v408
  %v431 = vpack.c.bf16 %v411, %v409
  %v432 = vpack.c.bf16 %v414, %v412
  %v433 = vpack.c.bf16 %v415, %v413
  %v434 = vpack.c.bf16 %v418, %v416
  %v435 = vpack.c.bf16 %v419, %v417
  %v436 = vld [vmem:[%s2] sm:$0xf]
  %v437 = vld [vmem:[%s2 + $0x4] sm:$0xf]
  %v438 = vld [vmem:[%s2 + $0x8] sm:$0xf]
  %v439 = vld [vmem:[%s2 + $0xc] sm:$0xf]
  %v440 = vld [vmem:[%s2 + $0x10] sm:$0xf]
  %v441 = vld [vmem:[%s2 + $0x14] sm:$0xf]
  %v442 = vld [vmem:[%s2 + $0x18] sm:$0xf]
  %v443 = vld [vmem:[%s2 + $0x1c] sm:$0xf]
  %v444 = vld [vmem:[%s2 + $0x20] sm:$0xf]
  %v445 = vld [vmem:[%s2 + $0x24] sm:$0xf]
  %v446 = vld [vmem:[%s2 + $0x28] sm:$0xf]
  %v447 = vld [vmem:[%s2 + $0x2c] sm:$0xf]
  %v448 = vld [vmem:[%s2 + $0x30] sm:$0xf]
  %v449 = vld [vmem:[%s2 + $0x34] sm:$0xf]
  %v450 = vld [vmem:[%s2 + $0x38] sm:$0xf]
  %v451 = vld [vmem:[%s2 + $0x3c] sm:$0xf]
  %v452 = vld [vmem:[%s2 + $0x40] sm:$0xf]
  %v453 = vld [vmem:[%s2 + $0x44] sm:$0xf]
  %v454 = vld [vmem:[%s2 + $0x48] sm:$0xf]
  %v455 = vld [vmem:[%s2 + $0x4c] sm:$0xf]
  %v456 = vld [vmem:[%s2 + $0x50] sm:$0xf]
  %v457 = vld [vmem:[%s2 + $0x54] sm:$0xf]
  %v458 = vld [vmem:[%s2 + $0x58] sm:$0xf]
  %v459 = vld [vmem:[%s2 + $0x5c] sm:$0xf]
  %v460 = vld [vmem:[%s2 + $0x60] sm:$0xf]
  %v461 = vld [vmem:[%s3] sm:$0x1]
  %v463 = vperm.slane %v461, 0
  %v490 = vunpack.c.l.b16 %v436
  %v491 = vunpack.c.l.b16 %v437
  %v492 = vunpack.c.l.b16 %v438
  %v493 = vunpack.c.l.b16 %v439
  %v494 = vunpack.c.l.b16 %v440
  %v495 = vunpack.c.l.b16 %v441
  %v496 = vunpack.c.l.b16 %v442
  %v497 = vunpack.c.l.b16 %v443
  %v498 = vunpack.c.l.b16 %v444
  %v499 = vunpack.c.l.b16 %v445
  %v500 = vunpack.c.l.b16 %v446
  %v501 = vunpack.c.l.b16 %v447
  %v502 = vunpack.c.l.b16 %v448
  %v503 = vunpack.c.l.b16 %v449
  %v504 = vunpack.c.l.b16 %v450
  %v505 = vunpack.c.l.b16 %v451
  %v506 = vunpack.c.l.b16 %v452
  %v507 = vunpack.c.l.b16 %v453
  %v508 = vunpack.c.l.b16 %v454
  %v509 = vunpack.c.l.b16 %v455
  %v510 = vunpack.c.l.b16 %v456
  %v511 = vunpack.c.l.b16 %v457
  %v512 = vunpack.c.l.b16 %v458
  %v513 = vunpack.c.l.b16 %v459
  %v514 = vunpack.c.l.b16 %v460
  %v515 = vpack.c.b16 %v491, %v490
  %v516 = vpack.c.b16 %v493, %v492
  %v517 = vpack.c.b16 %v495, %v494
  %v518 = vpack.c.b16 %v497, %v496
  %v519 = vpack.c.b16 %v499, %v498
  %v520 = vpack.c.b16 %v501, %v500
  %v521 = vpack.c.b16 %v503, %v502
  %v522 = vpack.c.b16 %v505, %v504
  %v523 = vpack.c.b16 %v507, %v506
  %v524 = vpack.c.b16 %v509, %v508
  %v525 = vpack.c.b16 %v511, %v510
  %v526 = vpack.c.b16 %v513, %v512
  %v527 = vpack.c.b16 %v514, %v514
  %vm540 = vcmask 588800
  %v542 = vsel %vm540, %v421, 0
  %v545 = vsel %vm540, %v423, 0
  %v548 = vsel %vm540, %v425, 0
  %v551 = vsel %vm540, %v427, 0
  %v554 = vsel %vm540, %v429, 0
  %v557 = vsel %vm540, %v431, 0
  %v560 = vsel %vm540, %v433, 0
  %v563 = vsel %vm540, %v435, 0
  %v566 = vsel %vm251, %v527, 0
  %568 = vmatpush.bf16.msra.mxu0 %v522
  %569 = vmatpush.bf16.msra.mxu0 %v521
  %570 = vmatpush.bf16.msra.mxu0 %v520
  %571 = vmatpush.bf16.msra.mxu0 %v519
  %572 = vmatpush.bf16.msra.mxu0 %v518
  %573 = vmatpush.bf16.msra.mxu0 %v517
  %574 = vmatpush.bf16.msra.mxu0 %v516
  %575 = vmatpush.bf16.msra.mxu0 %v515
  %576 = vmatmul.bf16.gmra.mxu0 %v420
  %v577 = vpop.f32.mrf.mxu0
  %v578 = vadd.f32 %v463, %v577
  %v579 = vpop.f32.mrf.mxu0
  %v580 = vadd.f32 %v463, %v579
  %581 = vmatmul.bf16.gmra.mxu0 %v422
  %v582 = vpop.f32.mrf.mxu0
  %v583 = vadd.f32 %v463, %v582
  %v584 = vpop.f32.mrf.mxu0
  %v585 = vadd.f32 %v463, %v584
  %586 = vmatmul.bf16.gmra.mxu0 %v424
  %v587 = vpop.f32.mrf.mxu0
  %v588 = vadd.f32 %v463, %v587
  %v589 = vpop.f32.mrf.mxu0
  %v590 = vadd.f32 %v463, %v589
  %591 = vmatmul.bf16.gmra.mxu0 %v426
  %v592 = vpop.f32.mrf.mxu0
  %v593 = vadd.f32 %v463, %v592
  %v594 = vpop.f32.mrf.mxu0
  %v595 = vadd.f32 %v463, %v594
  %596 = vmatmul.bf16.gmra.mxu0 %v428
  %v597 = vpop.f32.mrf.mxu0
  %v598 = vadd.f32 %v463, %v597
  %v599 = vpop.f32.mrf.mxu0
  %v600 = vadd.f32 %v463, %v599
  %601 = vmatmul.bf16.gmra.mxu0 %v430
  %v602 = vpop.f32.mrf.mxu0
  %v603 = vadd.f32 %v463, %v602
  %v604 = vpop.f32.mrf.mxu0
  %v605 = vadd.f32 %v463, %v604
  %606 = vmatmul.bf16.gmra.mxu0 %v432
  %v607 = vpop.f32.mrf.mxu0
  %v608 = vadd.f32 %v463, %v607
  %v609 = vpop.f32.mrf.mxu0
  %v610 = vadd.f32 %v463, %v609
  %611 = vmatmul.bf16.gmra.mxu0 %v434
  %v612 = vpop.f32.mrf.mxu0
  %v613 = vadd.f32 %v463, %v612
  %v614 = vpop.f32.mrf.mxu0
  %v615 = vadd.f32 %v463, %v614
  %616 = vdwg.mxu0
  %617 = vmatpush.bf16.msra.mxu0 0
  %618 = vmatpush.bf16.msra.mxu0 0
  %619 = vmatpush.bf16.msra.mxu0 0
  %620 = vmatpush.bf16.msra.mxu0 %v566
  %621 = vmatpush.bf16.msra.mxu0 %v526
  %622 = vmatpush.bf16.msra.mxu0 %v525
  %623 = vmatpush.bf16.msra.mxu0 %v524
  %624 = vmatpush.bf16.msra.mxu0 %v523
  %625 = vmatmul.bf16.gmra.mxu0 %v542
  %v626 = vpop.f32.mrf.mxu0
  %v627 = vadd.f32 %v578, %v626
  %v628 = vpop.f32.mrf.mxu0
  %v629 = vadd.f32 %v580, %v628
  %630 = vmatmul.bf16.gmra.mxu0 %v545
  %v631 = vpop.f32.mrf.mxu0
  %v632 = vadd.f32 %v583, %v631
  %v633 = vpop.f32.mrf.mxu0
  %v634 = vadd.f32 %v585, %v633
  %635 = vmatmul.bf16.gmra.mxu0 %v548
  %v636 = vpop.f32.mrf.mxu0
  %v637 = vadd.f32 %v588, %v636
  %v638 = vpop.f32.mrf.mxu0
  %v639 = vadd.f32 %v590, %v638
  %640 = vmatmul.bf16.gmra.mxu0 %v551
  %v641 = vpop.f32.mrf.mxu0
  %v642 = vadd.f32 %v593, %v641
  %v643 = vpop.f32.mrf.mxu0
  %v644 = vadd.f32 %v595, %v643
  %645 = vmatmul.bf16.gmra.mxu0 %v554
  %v646 = vpop.f32.mrf.mxu0
  %v647 = vadd.f32 %v598, %v646
  %v648 = vpop.f32.mrf.mxu0
  %v649 = vadd.f32 %v600, %v648
  %650 = vmatmul.bf16.gmra.mxu0 %v557
  %v651 = vpop.f32.mrf.mxu0
  %v652 = vadd.f32 %v603, %v651
  %v653 = vpop.f32.mrf.mxu0
  %v654 = vadd.f32 %v605, %v653
  %655 = vmatmul.bf16.gmra.mxu0 %v560
  %v656 = vpop.f32.mrf.mxu0
  %v657 = vadd.f32 %v608, %v656
  %v658 = vpop.f32.mrf.mxu0
  %v659 = vadd.f32 %v610, %v658
  %660 = vmatmul.bf16.gmra.mxu0 %v563
  %v661 = vpop.f32.mrf.mxu0
  %v662 = vadd.f32 %v613, %v661
  %v663 = vpop.f32.mrf.mxu0
  %v664 = vadd.f32 %v615, %v663
  %665 = vdwg.mxu0
  %vm666 = vcmask 15360
  %667 = vst.msk [vmem:[%s4] sm:$0xff] %vm666, %v627
  %668 = vst.msk [vmem:[%s4 + $0x8] sm:$0xff] %vm666, %v629
  %669 = vst.msk [vmem:[%s4 + $0x10] sm:$0xff] %vm666, %v632
  %670 = vst.msk [vmem:[%s4 + $0x18] sm:$0xff] %vm666, %v634
  %671 = vst.msk [vmem:[%s4 + $0x20] sm:$0xff] %vm666, %v637
  %672 = vst.msk [vmem:[%s4 + $0x28] sm:$0xff] %vm666, %v639
  %673 = vst.msk [vmem:[%s4 + $0x30] sm:$0xff] %vm666, %v642
  %674 = vst.msk [vmem:[%s4 + $0x38] sm:$0xff] %vm666, %v644
  %675 = vst.msk [vmem:[%s4 + $0x40] sm:$0xff] %vm666, %v647
  %676 = vst.msk [vmem:[%s4 + $0x48] sm:$0xff] %vm666, %v649
  %677 = vst.msk [vmem:[%s4 + $0x50] sm:$0xff] %vm666, %v652
  %678 = vst.msk [vmem:[%s4 + $0x58] sm:$0xff] %vm666, %v654
  %679 = vst.msk [vmem:[%s4 + $0x60] sm:$0xff] %vm666, %v657
  %680 = vst.msk [vmem:[%s4 + $0x68] sm:$0xff] %vm666, %v659
  %681 = vst.msk [vmem:[%s4 + $0x70] sm:$0xff] %vm666, %v662
  %682 = vst.msk [vmem:[%s4 + $0x78] sm:$0xff] %vm666, %v664
  // Predicated region
  $region18: #{tpu_custom_call.1} parent=0 // pred_check
    _
  $region19: #{tpu_custom_call.1} parent=0 // pred_check_branch
    %684 = sbr.rel (0) target = $region21
  $region20: #{tpu_custom_call.1} parent=0 // pred_region
    _
  $region21: #{tpu_custom_call.1} parent=0 // pred_fallthru
    _
  // Predicated region
  $region22: #{tpu_custom_call.1} parent=0 // pred_check
    _
  $region23: #{tpu_custom_call.1} parent=0 // pred_check_branch
    %686 = sbr.rel (0) target = $region25
  $region24: #{tpu_custom_call.1} parent=0 // pred_region
    _
  $region25: #{tpu_custom_call.1} parent=0 // pred_fallthru
    _

</llo_original>
